<compile_context>
chip_gen: v6e
topology: v6e:2x2x1
jax: 0.10.0
libtpu: 0.0.40
codegen_flags: <defaults>
</compile_context>

<pallas_src>
import math

import jax
import jax.numpy as jnp
from jax.experimental import pallas as pl
from jax.experimental.pallas import tpu as pltpu

_TILE_BYTES = 4 << 20            # ~4 MiB blocks: near HBM roofline, few grid steps
_MIN_SPLIT_TILE_BYTES = 1 << 20  # never shrink tiles below ~1 MiB just to add steps
_VMEM_LIMIT_BYTES = 48 << 20     # explicit scoped-VMEM limit; safe on v5e/v6e
                                 # (128 MiB physical) and v7x (64 MiB physical)


def _copy_kernel(x_ref, o_ref):
    # Identity pass over the current (bm, bl) tile.
    o_ref[...] = x_ref[...]


def _cdiv(a, b):
    return -(-a // b)


def _round_down(v, m):
    return (v // m) * m


def _sublane_multiple(dtype):
    # Sub-32-bit dtypes pack along sublanes: fully packed vregs need 8 (f32),
    # 16 (bf16/fp16) or 32 (int8/fp8) rows per block.
    itemsize = jnp.dtype(dtype).itemsize
    return 8 * max(1, 4 // itemsize)


def _num_tensorcores():
    # Best-effort TensorCore count for grid-splitting decisions: v7x exposes
    # two TensorCores per chip; v5e/v6e have one.
    try:
        kind = jax.devices()[0].device_kind.lower()
        if "v7" in kind or "7x" in kind:
            return 2
    except Exception:
        pass
    return 1


def _plan_slab(total, dtype):
    """Pick a lane-dense (M, L) re-view of the flat payload.

    Returns (M, L) with L % 128 == 0 and M * L == total, preferring an L whose
    row count M is a multiple of the dtype's sublane packing (fully packed
    vregs, no masked row tail).  Returns None when no 128-multiple divides
    the payload (handled by the (B, N) fallback with masked tail blocks).
    """
    sub = _sublane_multiple(dtype)
    lane_candidates = (16384, 8192, 4096, 2048, 1024, 512, 384, 256, 128)
    fallback = None
    for cand in lane_candidates:
        if total % cand == 0:
            m = total // cand
            if m % sub == 0:
                return m, cand
            if fallback is None:
                fallback = (m, cand)
    return fallback


def _plan_lanes(L, itemsize, sub):
    """Lane (last-dim) block: full extent if at least `sub` rows of it fit the
    tile budget, else the largest 128-multiple that does (masked lane tail)."""
    max_bl = _round_down(max(128, _TILE_BYTES // (sub * itemsize)), 128)
    return L if L <= max_bl else max_bl


def _plan_rows(M, bl, itemsize, sub, min_steps):
    """Row block: multiple of the sublane packing, ~_TILE_BYTES per block.

    Uses a cdiv grid (masked row tail), so the block never has to divide M.
    Splits further only when `min_steps` > 1 (multi-TensorCore chips) and only
    while blocks stay >= ~1 MiB (per-step overhead would dominate otherwise).
    """
    bytes_per_row = max(1, bl * itemsize)
    bm = max(sub, _round_down(_TILE_BYTES // bytes_per_row, sub))
    if bm >= M:
        bm = M  # single full-extent row block (always a legal block shape)
    while min_steps > 1 and _cdiv(M, bm) < min_steps and bm > sub:
        half = _round_down(bm // 2, sub)
        if half < sub or half * bytes_per_row < _MIN_SPLIT_TILE_BYTES:
            break
        bm = half
    return bm


def _tiled_copy_2d(x2d, min_row_steps=1):
    """Materializing identity copy of a 2-D array through VMEM."""
    M, L = x2d.shape
    itemsize = jnp.dtype(x2d.dtype).itemsize
    sub = _sublane_multiple(x2d.dtype)

    bl = _plan_lanes(L, itemsize, sub)
    bm = _plan_rows(M, bl, itemsize, sub, min_row_steps)
    n_rows = _cdiv(M, bm)
    n_lanes = _cdiv(L, bl)

    in_kwargs = {}
    if n_rows * n_lanes >= 3:
        # Identity "compute" hides no DMA latency at step boundaries; a third
        # input buffer lets the read DMA of step i+2 overlap the write-back
        # DMA of step i-1, keeping both HBM streams busy.
        in_kwargs["pipeline_mode"] = pl.Buffered(3)

    # TODO(synk): a manual HBM->HBM make_async_copy variant (memory_space=pl.ANY,
    # 2-4 outstanding chunked DMAs) would skip the VMEM round-trip entirely;
    # kept the simpler BlockSpec pipeline here.
    return pl.pallas_call(
        _copy_kernel,
        out_shape=jax.ShapeDtypeStruct((M, L), x2d.dtype),
        grid_spec=pltpu.PrefetchScalarGridSpec(
            num_scalar_prefetch=0,
            grid=(n_rows, n_lanes),
            in_specs=[pl.BlockSpec((bm, bl), lambda i, j: (i, j), **in_kwargs)],
            out_specs=pl.BlockSpec((bm, bl), lambda i, j: (i, j)),
        ),
        compiler_params=pltpu.CompilerParams(
            dimension_semantics=("parallel", "parallel"),
            vmem_limit_bytes=_VMEM_LIMIT_BYTES,
        ),
    )(x2d)


def flatten(x):
    """Pallas equivalent of torch Flatten: x.view(x.size(0), -1)."""
    B = x.shape[0]
    N = int(math.prod(x.shape[1:]))
    total = B * N
    if total == 0:
        return jnp.reshape(x, (B, N))

    # NOTE: in production flatten is metadata-only (`jnp.reshape(x, (B, -1))`,
    # zero HBM traffic); the kernel below is the mandated materializing copy.
    cores = _num_tensorcores()
    min_row_steps = 2 * cores if cores > 1 else 1

    plan = _plan_slab(total, x.dtype)
    if plan is not None:
        M, L = plan
        # Row-major reshapes are metadata-only; the data pass runs on the
        # lane-dense (M, L) slab and the result is re-viewed as (B, N).
        out = _tiled_copy_2d(jnp.reshape(x, (M, L)), min_row_steps)
        return jnp.reshape(out, (B, N))

    # Payload is not a multiple of 128 elements: keep the natural (B, N) view.
    # The lane dim is either the full extent (legal block shape) or 128-multiple
    # blocks with a masked tail; rows use a cdiv grid, so there is never a
    # single whole-payload block and no VMEM-OOM path for any shape.
    return _tiled_copy_2d(jnp.reshape(x, (B, N)), min_row_steps)


if __name__ == "__main__":
    key = jax.random.PRNGKey(0)

    # Small NCHW input consistent with a conv-feature-map flatten: (B, C, H, W).
    x = jax.random.normal(key, (2, 4, 16, 16), dtype=jnp.float32)
    y = jax.block_until_ready(flatten(x))
    ref = jnp.reshape(x, (x.shape[0], -1))
    assert y.shape == (2, 4 * 16 * 16), y.shape
    assert y.dtype == x.dtype
    assert jnp.array_equal(y, ref), "Pallas flatten mismatch (f32 slab path)"

    # Odd-sized payload (not a multiple of 128 elements) exercises the (B, N)
    # fallback path with a full-extent block.
    x_odd = jax.random.normal(jax.random.PRNGKey(1), (2, 3, 5, 7), dtype=jnp.float32)
    y_odd = jax.block_until_ready(flatten(x_odd))
    assert jnp.array_equal(y_odd, jnp.reshape(x_odd, (2, -1))), \
        "Pallas flatten mismatch (fallback path)"

    # bf16 exercises the dtype-aware sublane packing (16-row multiples).
    x_bf16 = jax.random.normal(jax.random.PRNGKey(2), (2, 4, 16, 16),
                               dtype=jnp.bfloat16)
    y_bf16 = jax.block_until_ready(flatten(x_bf16))
    assert y_bf16.dtype == jnp.bfloat16
    assert jnp.array_equal(y_bf16, jnp.reshape(x_bf16, (2, -1))), \
        "Pallas flatten mismatch (bf16 path)"

    print("KERNEL_OK")
</pallas_src>

<mosaic_0001>
module attributes {stable_mosaic.version = 11 : i64} {
  func.func @_copy_kernel(%arg0: i32, %arg1: i32, %arg2: memref<8x256xf32, #tpu.memory_space<vmem>>, %arg3: memref<8x256xf32, #tpu.memory_space<vmem>>) attributes {dimension_semantics = [#tpu.dimension_semantics<parallel>, #tpu.dimension_semantics<parallel>], iteration_bounds = array<i64: 1, 1>, scalar_prefetch = 0 : i64, scratch_operands = 0 : i64, tpu.core_type = #tpu.core_type<tc>, window_params = [{transform_indices = @transform_0, window_bounds = array<i64: 8, 256>}, {transform_indices = @transform_1, window_bounds = array<i64: 8, 256>}]} {
    %c0 = arith.constant 0 : index
    %c0_0 = arith.constant 0 : index
    %0 = vector.load %arg2[%c0, %c0_0] : memref<8x256xf32, #tpu.memory_space<vmem>>, vector<8x256xf32>
    %c0_1 = arith.constant 0 : index
    %c0_2 = arith.constant 0 : index
    %1 = vector.load %arg3[%c0_1, %c0_2] : memref<8x256xf32, #tpu.memory_space<vmem>>, vector<8x256xf32>
    tpu.vector_store %arg3[%c0_1, %c0_2], %0 {strides = array<i32>} : memref<8x256xf32, #tpu.memory_space<vmem>>, vector<8x256xf32>,
    return
  }
  func.func @transform_0(%arg0: i32, %arg1: i32) -> (i32, i32) {
    %c0_i32 = arith.constant 0 : i32
    return %arg0, %arg1 : i32, i32
  }
  func.func @transform_1(%arg0: i32, %arg1: i32) -> (i32, i32) {
    %c0_i32 = arith.constant 0 : i32
    return %arg0, %arg1 : i32, i32
  }
}

</mosaic_0001>

<llo_original>
// kernel: tpu_custom_call.1
$region0: #{tpu_custom_call.1}
  #allocation0 [shape = 'u32[]', space=smem, size = 0x4, offset = 0x4, fixed_abs, tag = 'smem constant byte address 0x4 - core index']
  #allocation1 [shape = 'u32[144,128]{1,0:T(1,128)}', space=vmem, size = 0x12000, scoped, tag = 'internal scratch']
  %s0 = inlined_call_operand.hbm [shape: f32[8,256], index: 0, kind: input, shape index: {}]
  %s1 = inlined_call_operand.hbm [shape: f32[8,256], index: 1, kind: output, shape index: {}]
  %s2 = sld [smem:[#allocation0]]
  $region18: #{tpu_custom_call.1} parent=0
    _
  %s4 = ssub.s32 1, %s2
  %s5 = scalar_select 0, %s4, %s2
  $region1: #{tpu_custom_call.1} parent=0
    #allocation2 [shape = 'u8[8192]{0}', space=vmem, size = 0x2000, scoped, tag = 'input window, operand 0, single buffered']
    #allocation3 [shape = 's32[1]{0}', space=sflag, size = 0x4, scoped, tag = 'scoped memory for tpu_custom_call.1']
    #allocation4 [shape = 's32[1]{0}', space=sflag, size = 0x4, scoped, tag = 'scoped memory for tpu_custom_call.1']
    #allocation5 [shape = 'u8[8192]{0}', space=vmem, size = 0x2000, scoped, tag = 'output window, operand 0, single buffered']
    %6 = vsyncpa [#allocation3], 0
    %7 = vsyncpa [#allocation4], 0
    // Predicated region
    $region2: #{tpu_custom_call.1} parent=1 // pred_check
      _
    $region3: #{tpu_custom_call.1} parent=1 // pred_check_branch
      %9 = sbr.rel (0) target = $region5
    $region4: #{tpu_custom_call.1} parent=1 // pred_region
      %s11 = ssub.s32 256, 256
      %12 = vsyncadd [#allocation3], %s11
      %s14 = sshll.u32 [#allocation2], 4
      %s15 = int_to_ptr.vmem [resolvable:$true] %s14
      %17 = dma.hbm_to_vmem [thread:$0]  %s0, 256, %s15, [#allocation3]
    $region5: #{tpu_custom_call.1} parent=1 // pred_fallthru
      _
    // Predicated region
    $region6: #{tpu_custom_call.1} parent=1 // pred_check
      _
    $region7: #{tpu_custom_call.1} parent=1 // pred_check_branch
      %19 = sbr.rel (0) target = $region9
    $region8: #{tpu_custom_call.1} parent=1 // pred_region
      %20 = dma.done [#allocation3], 256
    $region9: #{tpu_custom_call.1} parent=1 // pred_fallthru
      _
    %v21 = vld [vmem:[#allocation2] sm:$0xff]
    %v22 = vld [vmem:[#allocation2 + $0x8] sm:$0xff]
    %23 = vst [vmem:[#allocation5] sm:$0xff] %v21
    %24 = vst [vmem:[#allocation5 + $0x8] sm:$0xff] %v22
    // Predicated region
    $region10: #{tpu_custom_call.1} parent=1 // pred_check
      _
    $region11: #{tpu_custom_call.1} parent=1 // pred_check_branch
      %26 = sbr.rel (0) target = $region13
    $region12: #{tpu_custom_call.1} parent=1 // pred_region
      %s28 = ssub.s32 256, 256
      %29 = vsyncadd [#allocation4], %s28
      %s31 = sshll.u32 [#allocation5], 4
      %s32 = int_to_ptr.vmem [resolvable:$true] %s31
      %34 = dma.vmem_to_hbm [thread:$0]  %s32, 256, %s1, [#allocation4]
    $region13: #{tpu_custom_call.1} parent=1 // pred_fallthru
      _
    // Predicated region
    $region14: #{tpu_custom_call.1} parent=1 // pred_check
      _
    $region15: #{tpu_custom_call.1} parent=1 // pred_check_branch
      %36 = sbr.rel (0) target = $region17
    $region16: #{tpu_custom_call.1} parent=1 // pred_region
      %37 = dma.done [#allocation4], 256
    $region17: #{tpu_custom_call.1} parent=1 // pred_fallthru
      _
    %38 = vsyncpa [#allocation3], 1
    %39 = vsyncpa [#allocation4], 1

</llo_original>
